<compile_context>
chip_gen: v7x
topology: tpu7x:2x2x1
jax: 0.10.0
libtpu: 0.0.40
codegen_flags: <defaults>
</compile_context>

<pallas_src>
import functools

import jax
import jax.numpy as jnp
from jax import lax
from jax.experimental import pallas as pl
from jax.experimental.pallas import tpu as pltpu


_VMEM_LIMIT = 64 * 1024 * 1024  # raise scoped VMEM above the 16/32 MiB defaults


# --------------------------------------------------------------------------- #
# helpers
# --------------------------------------------------------------------------- #
def _gelu_tanh(x):
    # PyTorch gelu(approximate="tanh") / "gelu_pytorch_tanh"
    c = 0.7978845608028654  # sqrt(2/pi)
    return 0.5 * x * (1.0 + jnp.tanh(c * (x + 0.044715 * x * x * x)))


def _row_tile_pick(s, target):
    """Largest multiple-of-8 divisor of s that is <= target; full extent otherwise."""
    t = min(s, target)
    t -= t % 8
    while t >= 8:
        if s % t == 0:
            return t
        t -= 8
    return s  # full-extent second-to-last dim is always legal


def _col_tile_pick(dout, target):
    """Column tile: multiple of 128 dividing dout (bounded VMEM), else full dout."""
    if dout <= target:
        return dout
    t = target - target % 128
    while t >= 128:
        if dout % t == 0:
            return t
        t -= 128
    return dout


def _heads_per_block(h, hd):
    """Smallest divisor of h making the trailing attention block lane-aligned."""
    for hp in range(1, h + 1):
        if h % hp == 0 and (hp * hd) % 128 == 0:
            return hp
    return h  # fall back to all heads -> trailing dim == D (full extent)


_SINGLE_BUFFER_OK = None


def _single_buffer_ok():
    """Probe once whether pipeline_mode=pl.Buffered(1) is supported."""
    global _SINGLE_BUFFER_OK
    if _SINGLE_BUFFER_OK is None:
        try:
            def _k(x_ref, w_ref, o_ref):
                o_ref[...] = x_ref[...] + w_ref[...]

            x = jnp.zeros((16, 128), jnp.float32)
            w = jnp.ones((8, 128), jnp.float32)
            r = pl.pallas_call(
                _k,
                out_shape=jax.ShapeDtypeStruct((16, 128), jnp.float32),
                grid=(2,),
                in_specs=[
                    pl.BlockSpec((8, 128), lambda i: (i, 0)),
                    pl.BlockSpec((8, 128), lambda i: (0, 0),
                                 pipeline_mode=pl.Buffered(1)),
                ],
                out_specs=pl.BlockSpec((8, 128), lambda i: (i, 0)),
            )(x, w)
            jax.block_until_ready(r)
            _SINGLE_BUFFER_OK = True
        except Exception:
            _SINGLE_BUFFER_OK = False
    return _SINGLE_BUFFER_OK


def _spec(shape, index_map, *, single_buffer=False):
    """BlockSpec; grid-invariant blocks get a single buffer (no double-buffer waste)."""
    if single_buffer:
        return pl.BlockSpec(shape, index_map, pipeline_mode=pl.Buffered(1))
    return pl.BlockSpec(shape, index_map)


def _cparams(n_axes):
    return pltpu.CompilerParams(
        dimension_semantics=("parallel",) * n_axes,
        vmem_limit_bytes=_VMEM_LIMIT,
    )


# --------------------------------------------------------------------------- #
# kernels
# --------------------------------------------------------------------------- #
def _ln_qkv_kernel(x_ref, g_ref, b_ref, w_ref, wb_ref, o_ref, *, eps):
    # x: (1, TS, D)  g/b: (1, D)  w: (3, D, TN)  wb: (3, 1, TN)  o: (3, 1, TS, TN)
    x = x_ref[0].astype(jnp.float32)
    mu = jnp.mean(x, axis=-1, keepdims=True)
    xc = x - mu
    var = jnp.mean(xc * xc, axis=-1, keepdims=True)
    xn = xc * lax.rsqrt(var + eps)
    xn = xn * g_ref[...].astype(jnp.float32) + b_ref[...].astype(jnp.float32)
    xn = xn.astype(w_ref.dtype)                     # bf16 operand for the MXU
    for k in range(3):                              # q, k, v column groups
        y = jnp.dot(xn, w_ref[k], preferred_element_type=jnp.float32)
        y = y + wb_ref[k].astype(jnp.float32)
        o_ref[k, 0] = y.astype(o_ref.dtype)


def _ln_matmul_kernel(x_ref, g_ref, b_ref, w_ref, wb_ref, o_ref, *, eps, act):
    # x: (1, TS, D)  g/b: (1, D)  w: (D, TN)  wb: (1, TN)  o: (1, TS, TN)
    x = x_ref[0].astype(jnp.float32)
    mu = jnp.mean(x, axis=-1, keepdims=True)
    xc = x - mu
    var = jnp.mean(xc * xc, axis=-1, keepdims=True)
    xn = xc * lax.rsqrt(var + eps)
    xn = xn * g_ref[...].astype(jnp.float32) + b_ref[...].astype(jnp.float32)
    y = jnp.dot(xn.astype(w_ref.dtype), w_ref[...],
                preferred_element_type=jnp.float32)
    y = y + wb_ref[...].astype(jnp.float32)
    if act == "gelu_tanh":
        y = _gelu_tanh(y)
    o_ref[0] = y.astype(o_ref.dtype)


def _matmul_bias_res_kernel(x_ref, w_ref, b_ref, r_ref, o_ref):
    # x: (1, TS, Din)  w: (Din, TN)  b: (1, TN)  r/o: (1, TS, TN)
    y = jnp.dot(x_ref[0].astype(w_ref.dtype), w_ref[...],
                preferred_element_type=jnp.float32)
    y = y + b_ref[...].astype(jnp.float32) + r_ref[0].astype(jnp.float32)
    o_ref[0] = y.astype(o_ref.dtype)


def _attn_kernel(q_ref, k_ref, v_ref, o_ref, *, scale, hd, hp):
    # q: (1, 1, TQ, HP*hd)  k/v: (1, 1, S, HP*hd)  o: (1, TQ, HP*hd)
    q = q_ref[0, 0]
    k = k_ref[0, 0]
    v = v_ref[0, 0]
    outs = []
    for p in range(hp):                              # static unroll over heads
        sl = slice(p * hd, (p + 1) * hd)
        s = lax.dot_general(q[:, sl], k[:, sl], (((1,), (1,)), ((), ())),
                            preferred_element_type=jnp.float32)     # (TQ, S)
        s = s * scale
        s = s - jnp.max(s, axis=-1, keepdims=True)
        e = jnp.exp(s)
        e = e * pl.reciprocal(jnp.sum(e, axis=-1, keepdims=True), approx=True)
        outs.append(jnp.dot(e.astype(v.dtype), v[:, sl],
                            preferred_element_type=jnp.float32))    # (TQ, hd)
    o = outs[0] if hp == 1 else jnp.concatenate(outs, axis=-1)
    o_ref[0] = o.astype(o_ref.dtype)                 # single lane-dense store


# --------------------------------------------------------------------------- #
# pallas_call wrappers
# --------------------------------------------------------------------------- #
def _ln_qkv(x, gamma, beta, w3, b3, *, eps, out_dtype, row_tile, col_tile):
    B, S, D = x.shape
    ts = _row_tile_pick(S, row_tile)
    tn = _col_tile_pick(D, col_tile)
    ncol = D // tn
    sb = _single_buffer_ok()
    kernel = functools.partial(_ln_qkv_kernel, eps=eps)
    return pl.pallas_call(
        kernel,
        out_shape=jax.ShapeDtypeStruct((3, B, S, D), out_dtype),
        grid_spec=pltpu.PrefetchScalarGridSpec(
            num_scalar_prefetch=0,
            grid=(B, S // ts, ncol),
            in_specs=[
                pl.BlockSpec((1, ts, D), lambda b, s, j: (b, s, 0)),
                _spec((1, D), lambda b, s, j: (0, 0), single_buffer=sb),
                _spec((1, D), lambda b, s, j: (0, 0), single_buffer=sb),
                _spec((3, D, tn), lambda b, s, j: (0, 0, j),
                      single_buffer=sb and ncol == 1),
                _spec((3, 1, tn), lambda b, s, j: (0, 0, j),
                      single_buffer=sb and ncol == 1),
            ],
            out_specs=pl.BlockSpec((3, 1, ts, tn), lambda b, s, j: (0, b, s, j)),
        ),
        compiler_params=_cparams(3),
    )(x, gamma, beta, w3, b3)


def _ln_matmul(x, gamma, beta, w, b, *, eps, act, out_dtype, row_tile, col_tile):
    B, S, D = x.shape
    Dout = w.shape[1]
    ts = _row_tile_pick(S, row_tile)
    tn = _col_tile_pick(Dout, col_tile)
    ncol = Dout // tn
    sb = _single_buffer_ok()
    kernel = functools.partial(_ln_matmul_kernel, eps=eps, act=act)
    return pl.pallas_call(
        kernel,
        out_shape=jax.ShapeDtypeStruct((B, S, Dout), out_dtype),
        grid_spec=pltpu.PrefetchScalarGridSpec(
            num_scalar_prefetch=0,
            grid=(B, S // ts, ncol),
            in_specs=[
                pl.BlockSpec((1, ts, D), lambda b, s, j: (b, s, 0)),
                _spec((1, D), lambda b, s, j: (0, 0), single_buffer=sb),
                _spec((1, D), lambda b, s, j: (0, 0), single_buffer=sb),
                _spec((D, tn), lambda b, s, j: (0, j),
                      single_buffer=sb and ncol == 1),
                _spec((1, tn), lambda b, s, j: (0, j),
                      single_buffer=sb and ncol == 1),
            ],
            out_specs=pl.BlockSpec((1, ts, tn), lambda b, s, j: (b, s, j)),
        ),
        compiler_params=_cparams(3),
    )(x, gamma, beta, w, b)


def _matmul_bias_res(x, w, b, res, *, row_tile, col_tile):
    B, S, Din = x.shape
    Dout = w.shape[1]
    ts = _row_tile_pick(S, row_tile)
    tn = _col_tile_pick(Dout, col_tile)
    ncol = Dout // tn
    sb = _single_buffer_ok()
    return pl.pallas_call(
        _matmul_bias_res_kernel,
        out_shape=jax.ShapeDtypeStruct((B, S, Dout), res.dtype),
        grid_spec=pltpu.PrefetchScalarGridSpec(
            num_scalar_prefetch=0,
            grid=(B, S // ts, ncol),
            in_specs=[
                pl.BlockSpec((1, ts, Din), lambda b, s, j: (b, s, 0)),
                _spec((Din, tn), lambda b, s, j: (0, j),
                      single_buffer=sb and ncol == 1),
                _spec((1, tn), lambda b, s, j: (0, j),
                      single_buffer=sb and ncol == 1),
                pl.BlockSpec((1, ts, tn), lambda b, s, j: (b, s, j)),
            ],
            out_specs=pl.BlockSpec((1, ts, tn), lambda b, s, j: (b, s, j)),
        ),
        compiler_params=_cparams(3),
    )(x, w, b, res)


def _attention(qkv, *, num_heads, scale, out_dtype, q_tile):
    # qkv: (3, B, S, D) with heads laid out head-major along D.
    _, B, S, D = qkv.shape
    H = num_heads
    hd = D // H
    hp = _heads_per_block(H, hd)
    hpd = hp * hd
    tq = _row_tile_pick(S, q_tile)
    kernel = functools.partial(_attn_kernel, scale=scale, hd=hd, hp=hp)
    return pl.pallas_call(
        kernel,
        out_shape=jax.ShapeDtypeStruct((B, S, D), out_dtype),
        grid_spec=pltpu.PrefetchScalarGridSpec(
            num_scalar_prefetch=0,
            grid=(B, H // hp, S // tq),
            in_specs=[
                pl.BlockSpec((1, 1, tq, hpd), lambda b, g, i: (0, b, i, g)),  # Q tile
                pl.BlockSpec((1, 1, S, hpd), lambda b, g, i: (1, b, 0, g)),   # full K
                pl.BlockSpec((1, 1, S, hpd), lambda b, g, i: (2, b, 0, g)),   # full V
            ],
            out_specs=pl.BlockSpec((1, tq, hpd), lambda b, g, i: (b, i, g)),
        ),
        compiler_params=_cparams(3),
    )(qkv, qkv, qkv)


# --------------------------------------------------------------------------- #
# encoder layer / encoder
# --------------------------------------------------------------------------- #
def prepare_layer_params(p, weight_dtype=jnp.bfloat16):
    """Cast the big matmul weights to bf16, reshape params for the kernels."""
    D = p["ln1_g"].shape[0]
    I = p["w1"].shape[1]
    f32 = jnp.float32
    return dict(
        ln1_g=p["ln1_g"].reshape(1, D).astype(f32),
        ln1_b=p["ln1_b"].reshape(1, D).astype(f32),
        # (D, 3D) column blocks [q | k | v] -> (3, D, D)
        wqkv3=p["wqkv"].reshape(D, 3, D).transpose(1, 0, 2).astype(weight_dtype),
        bqkv3=p["bqkv"].reshape(3, 1, D).astype(f32),
        wout=p["wout"].astype(weight_dtype),
        bout=p["bout"].reshape(1, D).astype(f32),
        ln2_g=p["ln2_g"].reshape(1, D).astype(f32),
        ln2_b=p["ln2_b"].reshape(1, D).astype(f32),
        w1=p["w1"].astype(weight_dtype),
        b1=p["b1"].reshape(1, I).astype(f32),
        w2=p["w2"].astype(weight_dtype),
        b2=p["b2"].reshape(1, D).astype(f32),
    )


def siglip_encoder_layer(x, p, *, num_heads, eps=1e-6, inter_dtype=jnp.bfloat16,
                         row_tile=256, col_tile=512, q_tile=512):
    B, S, D = x.shape
    hd = D // num_heads

    # LN1 + fused QKV projection -> (3, B, S, D) slab (no head-split transposes)
    qkv = _ln_qkv(x, p["ln1_g"], p["ln1_b"], p["wqkv3"], p["bqkv3"],
                  eps=eps, out_dtype=inter_dtype,
                  row_tile=row_tile, col_tile=col_tile)

    # MHA straight out of / into (B, S, D)-layout slabs
    attn = _attention(qkv, num_heads=num_heads, scale=hd ** -0.5,
                      out_dtype=inter_dtype, q_tile=q_tile)

    # out_proj + bias + residual (residual carrier stays f32)
    h1 = _matmul_bias_res(attn, p["wout"], p["bout"], x,
                          row_tile=row_tile, col_tile=col_tile)

    # LN2 + fc1 + GELU(tanh) (fused)
    ff = _ln_matmul(h1, p["ln2_g"], p["ln2_b"], p["w1"], p["b1"],
                    eps=eps, act="gelu_tanh", out_dtype=inter_dtype,
                    row_tile=row_tile, col_tile=col_tile)

    # fc2 + bias + residual
    out = _matmul_bias_res(ff, p["w2"], p["b2"], h1,
                           row_tile=row_tile, col_tile=col_tile)
    return out


def siglip_encoder(inputs_embeds, layer_params, *, num_heads, eps=1e-6,
                   return_all_hidden_states=False,
                   weight_dtype=jnp.bfloat16, inter_dtype=jnp.bfloat16,
                   row_tile=256, col_tile=512, q_tile=512):
    """layer_params: list of dicts; linear weights stored as [in, out]."""
    prepared = [prepare_layer_params(p, weight_dtype) for p in layer_params]
    hidden_states_pool = [inputs_embeds]
    h = inputs_embeds
    for p in prepared:
        h = siglip_encoder_layer(h, p, num_heads=num_heads, eps=eps,
                                 inter_dtype=inter_dtype, row_tile=row_tile,
                                 col_tile=col_tile, q_tile=q_tile)
        if return_all_hidden_states:
            hidden_states_pool.append(h)
    if return_all_hidden_states:
        return hidden_states_pool
    return h


# --------------------------------------------------------------------------- #
# pure-JAX reference (mirrors the PyTorch module semantics)
# --------------------------------------------------------------------------- #
def _ref_encoder_layer(x, p, H, eps):
    B, S, D = x.shape
    hd = D // H

    def ln(z, g, b):
        mu = jnp.mean(z, -1, keepdims=True)
        var = jnp.mean((z - mu) ** 2, -1, keepdims=True)
        return (z - mu) / jnp.sqrt(var + eps) * g + b

    res = x
    h = ln(x, p["ln1_g"], p["ln1_b"])
    qkv = h @ p["wqkv"] + p["bqkv"]
    q, k, v = jnp.split(qkv, 3, axis=-1)
    q = q.reshape(B, S, H, hd).transpose(0, 2, 1, 3)
    k = k.reshape(B, S, H, hd).transpose(0, 2, 1, 3)
    v = v.reshape(B, S, H, hd).transpose(0, 2, 1, 3)
    a = jax.nn.softmax(jnp.einsum("bhqd,bhkd->bhqk", q * hd ** -0.5, k), axis=-1)
    o = jnp.einsum("bhqk,bhkd->bhqd", a, v).transpose(0, 2, 1, 3).reshape(B, S, D)
    h = o @ p["wout"] + p["bout"] + res
    res = h
    f = _gelu_tanh(ln(h, p["ln2_g"], p["ln2_b"]) @ p["w1"] + p["b1"])
    return f @ p["w2"] + p["b2"] + res


def _init_layer(key, D, I):
    ks = jax.random.split(key, 12)
    s = 0.05
    f32 = jnp.float32
    return dict(
        ln1_g=1.0 + 0.1 * jax.random.normal(ks[0], (D,), f32),
        ln1_b=0.1 * jax.random.normal(ks[1], (D,), f32),
        wqkv=s * jax.random.normal(ks[2], (D, 3 * D), f32),
        bqkv=s * jax.random.normal(ks[3], (3 * D,), f32),
        wout=s * jax.random.normal(ks[4], (D, D), f32),
        bout=s * jax.random.normal(ks[5], (D,), f32),
        ln2_g=1.0 + 0.1 * jax.random.normal(ks[6], (D,), f32),
        ln2_b=0.1 * jax.random.normal(ks[7], (D,), f32),
        w1=s * jax.random.normal(ks[8], (D, I), f32),
        b1=s * jax.random.normal(ks[9], (I,), f32),
        w2=s * jax.random.normal(ks[10], (I, D), f32),
        b2=s * jax.random.normal(ks[11], (D,), f32),
    )


if __name__ == "__main__":
    # Small SigLIP-like config: batch=2, seq=8, hidden=32, heads=4, mlp=64, 2 layers
    B, S, D, H, I, L = 2, 8, 32, 4, 64, 2
    eps = 1e-6

    key = jax.random.PRNGKey(0)
    keys = jax.random.split(key, L + 1)
    x = jax.random.normal(keys[0], (B, S, D), jnp.float32)
    params = [_init_layer(keys[i + 1], D, I) for i in range(L)]

    # pure-JAX reference
    ref = x
    for p in params:
        ref = _ref_encoder_layer(ref, p, H, eps)

    # f32 path: validates the kernel math itself
    out_f32 = siglip_encoder(x, params, num_heads=H, eps=eps,
                             weight_dtype=jnp.float32, inter_dtype=jnp.float32)
    out_f32 = jax.block_until_ready(out_f32)
    assert out_f32.shape == (B, S, D)
    err32 = float(jnp.max(jnp.abs(out_f32 - ref)))
    assert jnp.allclose(out_f32, ref, atol=5e-3, rtol=5e-3), f"f32 max abs err {err32}"

    # bf16 mixed-precision path (production configuration)
    out_bf = siglip_encoder(x, params, num_heads=H, eps=eps)
    out_bf = jax.block_until_ready(out_bf)
    assert out_bf.shape == (B, S, D)
    errbf = float(jnp.max(jnp.abs(out_bf - ref)))
    assert jnp.allclose(out_bf, ref, atol=5e-2, rtol=5e-2), f"bf16 max abs err {errbf}"

    # also exercise return_all_hidden_states path
    pool = siglip_encoder(x, params, num_heads=H, eps=eps,
                          return_all_hidden_states=True)
    jax.block_until_ready(pool[-1])
    assert len(pool) == L + 1

    print("KERNEL_OK")
</pallas_src>

<mosaic_0001>
module attributes {stable_mosaic.version = 11 : i64} {
  func.func @_k(%arg0: i32, %arg1: memref<8x128xf32, #tpu.memory_space<vmem>>, %arg2: memref<8x128xf32, #tpu.memory_space<vmem>>, %arg3: memref<8x128xf32, #tpu.memory_space<vmem>>) attributes {dimension_semantics = [#tpu.dimension_semantics<arbitrary>], iteration_bounds = array<i64: 2>, scalar_prefetch = 0 : i64, scratch_operands = 0 : i64, tpu.core_type = #tpu.core_type<tc>, window_params = [{transform_indices = @transform_0, window_bounds = array<i64: 8, 128>}, {pipeline_mode = #tpu.pipeline_mode<synchronous>, transform_indices = @transform_1, window_bounds = array<i64: 8, 128>}, {transform_indices = @transform_2, window_bounds = array<i64: 8, 128>}]} {
    %c0 = arith.constant 0 : index
    %c0_0 = arith.constant 0 : index
    %0 = vector.load %arg1[%c0, %c0_0] : memref<8x128xf32, #tpu.memory_space<vmem>>, vector<8x128xf32>
    %c0_1 = arith.constant 0 : index
    %c0_2 = arith.constant 0 : index
    %1 = vector.load %arg2[%c0_1, %c0_2] : memref<8x128xf32, #tpu.memory_space<vmem>>, vector<8x128xf32>
    %2 = arith.addf %0, %1 : vector<8x128xf32>
    %c0_3 = arith.constant 0 : index
    %c0_4 = arith.constant 0 : index
    %3 = vector.load %arg3[%c0_3, %c0_4] : memref<8x128xf32, #tpu.memory_space<vmem>>, vector<8x128xf32>
    tpu.vector_store %arg3[%c0_3, %c0_4], %2 {strides = array<i32>} : memref<8x128xf32, #tpu.memory_space<vmem>>, vector<8x128xf32>,
    return
  }
  func.func @transform_0(%arg0: i32) -> (i32, i32) {
    %c0_i32 = arith.constant 0 : i32
    %c0_i32_0 = arith.constant 0 : i32
    return %arg0, %c0_i32 : i32, i32
  }
  func.func @transform_1(%arg0: i32) -> (i32, i32) {
    %c0_i32 = arith.constant 0 : i32
    %c0_i32_0 = arith.constant 0 : i32
    %c0_i32_1 = arith.constant 0 : i32
    return %c0_i32, %c0_i32_0 : i32, i32
  }
  func.func @transform_2(%arg0: i32) -> (i32, i32) {
    %c0_i32 = arith.constant 0 : i32
    %c0_i32_0 = arith.constant 0 : i32
    return %arg0, %c0_i32 : i32, i32
  }
}

module attributes {stable_mosaic.version = 11 : i64} {
  func.func @_ln_qkv_kernel(%arg0: i32, %arg1: i32, %arg2: i32, %arg3: memref<1x8x32xf32, #tpu.memory_space<vmem>>, %arg4: memref<1x32xf32, #tpu.memory_space<vmem>>, %arg5: memref<1x32xf32, #tpu.memory_space<vmem>>, %arg6: memref<3x32x32xf32, #tpu.memory_space<vmem>>, %arg7: memref<3x1x32xf32, #tpu.memory_space<vmem>>, %arg8: memref<3x1x8x32xf32, #tpu.memory_space<vmem>>) attributes {dimension_semantics = [#tpu.dimension_semantics<parallel>, #tpu.dimension_semantics<parallel>, #tpu.dimension_semantics<parallel>], iteration_bounds = array<i64: 2, 1, 1>, scalar_prefetch = 0 : i64, scratch_operands = 0 : i64, tpu.core_type = #tpu.core_type<tc>, window_params = [{transform_indices = @transform_0, window_bounds = array<i64: 1, 8, 32>}, {pipeline_mode = #tpu.pipeline_mode<synchronous>, transform_indices = @transform_1, window_bounds = array<i64: 1, 32>}, {pipeline_mode = #tpu.pipeline_mode<synchronous>, transform_indices = @transform_2, window_bounds = array<i64: 1, 32>}, {transform_indices = @transform_3, window_bounds = array<i64: 3, 32, 32>}, {transform_indices = @transform_4, window_bounds = array<i64: 3, 1, 32>}, {transform_indices = @transform_5, window_bounds = array<i64: 3, 1, 8, 32>}]} {
    %c0 = arith.constant 0 : index
    %c0_0 = arith.constant 0 : index
    %c0_1 = arith.constant 0 : index
    %0 = vector.load %arg3[%c0, %c0_0, %c0_1] : memref<1x8x32xf32, #tpu.memory_space<vmem>>, vector<1x8x32xf32>
    %1 = vector.shape_cast %0 : vector<1x8x32xf32> to vector<8x32xf32>
    %cst = arith.constant dense<0.000000e+00> : vector<8xf32>
    %2 = vector.multi_reduction <add>, %1, %cst [1] : vector<8x32xf32> to vector<8xf32>
    %3 = vector.shape_cast %2 : vector<8xf32> to vector<8x1xf32>
    %cst_2 = arith.constant 3.200000e+01 : f32
    %4 = vector.broadcast %cst_2 : f32 to vector<8x1xf32>
    %5 = arith.divf %3, %4 : vector<8x1xf32>
    %6 = vector.broadcast %5 : vector<8x1xf32> to vector<8x32xf32>
    %7 = arith.subf %1, %6 : vector<8x32xf32>
    %8 = arith.mulf %7, %7 : vector<8x32xf32>
    %cst_3 = arith.constant dense<0.000000e+00> : vector<8xf32>
    %9 = vector.multi_reduction <add>, %8, %cst_3 [1] : vector<8x32xf32> to vector<8xf32>
    %10 = vector.shape_cast %9 : vector<8xf32> to vector<8x1xf32>
    %cst_4 = arith.constant 3.200000e+01 : f32
    %11 = vector.broadcast %cst_4 : f32 to vector<8x1xf32>
    %12 = arith.divf %10, %11 : vector<8x1xf32>
    %cst_5 = arith.constant 9.99999997E-7 : f32
    %13 = vector.broadcast %cst_5 : f32 to vector<8x1xf32>
    %14 = arith.addf %12, %13 : vector<8x1xf32>
    %15 = math.rsqrt %14 : vector<8x1xf32>
    %16 = vector.broadcast %15 : vector<8x1xf32> to vector<8x32xf32>
    %17 = arith.mulf %7, %16 : vector<8x32xf32>
    %c0_6 = arith.constant 0 : index
    %c0_7 = arith.constant 0 : index
    %18 = vector.load %arg4[%c0_6, %c0_7] : memref<1x32xf32, #tpu.memory_space<vmem>>, vector<1x32xf32>
    %19 = vector.broadcast %18 : vector<1x32xf32> to vector<8x32xf32>
    %20 = arith.mulf %17, %19 : vector<8x32xf32>
    %c0_8 = arith.constant 0 : index
    %c0_9 = arith.constant 0 : index
    %21 = vector.load %arg5[%c0_8, %c0_9] : memref<1x32xf32, #tpu.memory_space<vmem>>, vector<1x32xf32>
    %22 = vector.broadcast %21 : vector<1x32xf32> to vector<8x32xf32>
    %23 = arith.addf %20, %22 : vector<8x32xf32>
    %c0_10 = arith.constant 0 : index
    %c0_11 = arith.constant 0 : index
    %c0_12 = arith.constant 0 : index
    %24 = vector.load %arg6[%c0_10, %c0_11, %c0_12] : memref<3x32x32xf32, #tpu.memory_space<vmem>>, vector<1x32x32xf32>
    %25 = vector.shape_cast %24 : vector<1x32x32xf32> to vector<32x32xf32>
    %cst_13 = arith.constant dense<0.000000e+00> : vector<8x32xf32>
    %26 = tpu.matmul %23, %25, %cst_13 {dimension_numbers = #tpu.dot_dimension_numbers<[1], [0], [0], [1], [0, 0, 1, 1], [], []>} : vector<8x32xf32>, vector<32x32xf32>, vector<8x32xf32> -> vector<8x32xf32>
    %c0_14 = arith.constant 0 : index
    %c0_15 = arith.constant 0 : index
    %c0_16 = arith.constant 0 : index
    %27 = vector.load %arg7[%c0_14, %c0_15, %c0_16] : memref<3x1x32xf32, #tpu.memory_space<vmem>>, vector<1x1x32xf32>
    %28 = vector.shape_cast %27 : vector<1x1x32xf32> to vector<1x32xf32>
    %29 = vector.broadcast %28 : vector<1x32xf32> to vector<8x32xf32>
    %30 = arith.addf %26, %29 : vector<8x32xf32>
    %c0_17 = arith.constant 0 : index
    %c0_18 = arith.constant 0 : index
    %c0_19 = arith.constant 0 : index
    %c0_20 = arith.constant 0 : index
    %31 = vector.load %arg8[%c0_17, %c0_18, %c0_19, %c0_20] : memref<3x1x8x32xf32, #tpu.memory_space<vmem>>, vector<1x1x8x32xf32>
    %32 = vector.shape_cast %31 : vector<1x1x8x32xf32> to vector<8x32xf32>
    %33 = vector.shape_cast %30 : vector<8x32xf32> to vector<1x1x8x32xf32>
    tpu.vector_store %arg8[%c0_17, %c0_18, %c0_19, %c0_20], %33 {strides = array<i32>} : memref<3x1x8x32xf32, #tpu.memory_space<vmem>>, vector<1x1x8x32xf32>,
    %c1 = arith.constant 1 : index
    %c0_21 = arith.constant 0 : index
    %c0_22 = arith.constant 0 : index
    %34 = vector.load %arg6[%c1, %c0_21, %c0_22] : memref<3x32x32xf32, #tpu.memory_space<vmem>>, vector<1x32x32xf32>
    %35 = vector.shape_cast %34 : vector<1x32x32xf32> to vector<32x32xf32>
    %cst_23 = arith.constant dense<0.000000e+00> : vector<8x32xf32>
    %36 = tpu.matmul %23, %35, %cst_23 {dimension_numbers = #tpu.dot_dimension_numbers<[1], [0], [0], [1], [0, 0, 1, 1], [], []>} : vector<8x32xf32>, vector<32x32xf32>, vector<8x32xf32> -> vector<8x32xf32>
    %c1_24 = arith.constant 1 : index
    %c0_25 = arith.constant 0 : index
    %c0_26 = arith.constant 0 : index
    %37 = vector.load %arg7[%c1_24, %c0_25, %c0_26] : memref<3x1x32xf32, #tpu.memory_space<vmem>>, vector<1x1x32xf32>
    %38 = vector.shape_cast %37 : vector<1x1x32xf32> to vector<1x32xf32>
    %39 = vector.broadcast %38 : vector<1x32xf32> to vector<8x32xf32>
    %40 = arith.addf %36, %39 : vector<8x32xf32>
    %c1_27 = arith.constant 1 : index
    %c0_28 = arith.constant 0 : index
    %c0_29 = arith.constant 0 : index
    %c0_30 = arith.constant 0 : index
    %41 = vector.load %arg8[%c1_27, %c0_28, %c0_29, %c0_30] : memref<3x1x8x32xf32, #tpu.memory_space<vmem>>, vector<1x1x8x32xf32>
    %42 = vector.shape_cast %41 : vector<1x1x8x32xf32> to vector<8x32xf32>
    %43 = vector.shape_cast %40 : vector<8x32xf32> to vector<1x1x8x32xf32>
    tpu.vector_store %arg8[%c1_27, %c0_28, %c0_29, %c0_30], %43 {strides = array<i32>} : memref<3x1x8x32xf32, #tpu.memory_space<vmem>>, vector<1x1x8x32xf32>,
    %c2 = arith.constant 2 : index
    %c0_31 = arith.constant 0 : index
    %c0_32 = arith.constant 0 : index
    %44 = vector.load %arg6[%c2, %c0_31, %c0_32] : memref<3x32x32xf32, #tpu.memory_space<vmem>>, vector<1x32x32xf32>
    %45 = vector.shape_cast %44 : vector<1x32x32xf32> to vector<32x32xf32>
    %cst_33 = arith.constant dense<0.000000e+00> : vector<8x32xf32>
    %46 = tpu.matmul %23, %45, %cst_33 {dimension_numbers = #tpu.dot_dimension_numbers<[1], [0], [0], [1], [0, 0, 1, 1], [], []>} : vector<8x32xf32>, vector<32x32xf32>, vector<8x32xf32> -> vector<8x32xf32>
    %c2_34 = arith.constant 2 : index
    %c0_35 = arith.constant 0 : index
    %c0_36 = arith.constant 0 : index
    %47 = vector.load %arg7[%c2_34, %c0_35, %c0_36] : memref<3x1x32xf32, #tpu.memory_space<vmem>>, vector<1x1x32xf32>
    %48 = vector.shape_cast %47 : vector<1x1x32xf32> to vector<1x32xf32>
    %49 = vector.broadcast %48 : vector<1x32xf32> to vector<8x32xf32>
    %50 = arith.addf %46, %49 : vector<8x32xf32>
    %c2_37 = arith.constant 2 : index
    %c0_38 = arith.constant 0 : index
    %c0_39 = arith.constant 0 : index
    %c0_40 = arith.constant 0 : index
    %51 = vector.load %arg8[%c2_37, %c0_38, %c0_39, %c0_40] : memref<3x1x8x32xf32, #tpu.memory_space<vmem>>, vector<1x1x8x32xf32>
    %52 = vector.shape_cast %51 : vector<1x1x8x32xf32> to vector<8x32xf32>
    %53 = vector.shape_cast %50 : vector<8x32xf32> to vector<1x1x8x32xf32>
    tpu.vector_store %arg8[%c2_37, %c0_38, %c0_39, %c0_40], %53 {strides = array<i32>} : memref<3x1x8x32xf32, #tpu.memory_space<vmem>>, vector<1x1x8x32xf32>,
    return
  }
  func.func @transform_0(%arg0: i32, %arg1: i32, %arg2: i32) -> (i32, i32, i32) {
    %c0_i32 = arith.constant 0 : i32
    %c0_i32_0 = arith.constant 0 : i32
    return %arg0, %arg1, %c0_i32 : i32, i32, i32
  }
  func.func @transform_1(%arg0: i32, %arg1: i32, %arg2: i32) -> (i32, i32) {
    %c0_i32 = arith.constant 0 : i32
    %c0_i32_0 = arith.constant 0 : i32
    %c0_i32_1 = arith.constant 0 : i32
    return %c0_i32, %c0_i32_0 : i32, i32
  }
  func.func @transform_2(%arg0: i32, %arg1: i32, %arg2: i32) -> (i32, i32) {
    %c0_i32 = arith.constant 0 : i32
    %c0_i32_0 = arith.constant 0 : i32
    %c0_i32_1 = arith.constant 0 : i32
    return %c0_i32, %c0_i32_0 : i32, i32
  }
  func.func @transform_3(%arg0: i32, %arg1: i32, %arg2: i32) -> (i32, i32, i32) {
    %c0_i32 = arith.constant 0 : i32
    %c0_i32_0 = arith.constant 0 : i32
    %c0_i32_1 = arith.constant 0 : i32
    return %c0_i32, %c0_i32_0, %arg2 : i32, i32, i32
  }
  func.func @transform_4(%arg0: i32, %arg1: i32, %arg2: i32) -> (i32, i32, i32) {
    %c0_i32 = arith.constant 0 : i32
    %c0_i32_0 = arith.constant 0 : i32
    %c0_i32_1 = arith.constant 0 : i32
    return %c0_i32, %c0_i32_0, %arg2 : i32, i32, i32
  }
  func.func @transform_5(%arg0: i32, %arg1: i32, %arg2: i32) -> (i32, i32, i32, i32) {
    %c0_i32 = arith.constant 0 : i32
    %c0_i32_0 = arith.constant 0 : i32
    return %c0_i32, %arg0, %arg1, %arg2 : i32, i32, i32, i32
  }
}

</mosaic_0001>

<llo_original>
// kernel: tpu_custom_call.1
$region0: #{tpu_custom_call.1}
  #allocation0 [shape = 'u32[]', space=smem, size = 0x4, offset = 0x4, fixed_abs, tag = 'smem constant byte address 0x4 - core index']
  #allocation1 [shape = 'u32[144,128]{1,0:T(1,128)}', space=vmem, size = 0x12000, scoped, tag = 'internal scratch']
  %s0 = inlined_call_operand.hbm [shape: f32[16,128], index: 0, kind: input, shape index: {}]
  %s1 = inlined_call_operand.hbm [shape: f32[8,128], index: 1, kind: input, shape index: {}]
  %s2 = inlined_call_operand.hbm [shape: f32[16,128], index: 2, kind: output, shape index: {}]
  %s3 = sld [smem:[#allocation0]]
  $region49: #{tpu_custom_call.1} parent=0
    _
  %s5 = ssub.s32 1, %s3
  %s6 = scalar_select 0, %s5, %s3
  $region1: #{tpu_custom_call.1} parent=0
    #allocation2 [shape = 'u8[8192]{0}', space=vmem, size = 0x2000, scoped, tag = 'input window, operand 0']
    #allocation3 [shape = 's32[2]{0}', space=sflag, size = 0x8, scoped, tag = 'scoped memory for tpu_custom_call.1']
    #allocation4 [shape = 's32[2]{0}', space=sflag, size = 0x8, scoped, tag = 'scoped memory for tpu_custom_call.1']
    #allocation5 [shape = 'u8[4096]{0}', space=vmem, size = 0x1000, scoped, tag = 'input window, operand 1, single buffered']
    #allocation6 [shape = 's32[1]{0}', space=sflag, size = 0x4, scoped, tag = 'scoped memory for tpu_custom_call.1']
    #allocation7 [shape = 'u8[8192]{0}', space=vmem, size = 0x2000, scoped, tag = 'output window, operand 0']
    %7 = vsyncpa [#allocation3], 0
    %s8 = scalar_lea.sflag [#allocation3], 1
    %9 = vsyncpa %s8, 0
    %10 = vsyncpa [#allocation6], 0
    %11 = vsyncpa [#allocation4], 0
    %s12 = scalar_lea.sflag [#allocation4], 1
    %13 = vsyncpa %s12, 0
    loop: start=0, step=1, limit=4
    $region2: #{tpu_custom_call.1} parent=1 // loop_pre_header
      _
    $region3: #{tpu_custom_call.1} parent=1 // loop_header
      %s15 = sphi 0, %s19
      %p16 = scmp.ge.s32.totalorder %s15, 4
      %s25 = sphi 0, %s27
      %s28 = sphi 0, %s25
      %s29 = sphi 0, %s28
      %s45 = sphi 0, %s29
      %s49 = sphi 0, %s49
      %s51 = sphi 0, %s49
      %s52 = sphi 0, %s51
      %s66 = sphi 0, %s52
      %s72 = sphi 0, %s74
      %s75 = sphi 0, %s72
      %s76 = sphi 0, %s75
      %s92 = sphi 0, %s76
    $region4: #{tpu_custom_call.1} parent=1 // loop_header_branch
      %18 = sbr.rel (%p16) target = $region8
    $region5: #{tpu_custom_call.1} parent=1 // loop_body
      %s20 = ssub.s32 %s15, 1
      %s21 = ssub.s32 %s15, 2
      %s22 = sadd.s32 %s15, 1
      %s23 = ssub.s32 %s15, %s22
      %p24 = scmp.eq.s32.totalorder %s23, 0
      %s26 = sadd.s32 %s25, 1
      %s27 = scalar_select %p24, %s25, %s26
      %p30 = pneg %p24
      %p31 = scmp.eq.s32.totalorder %s15, 1
      %p32 = por %p30, %p31
      %p33 = scmp.ne.s32.totalorder %s25, %s28
      %p34 = scmp.eq.s32.totalorder %s15, 0
      %p35 = por %p33, %p34
      %p36 = scmp.ne.s32.totalorder %s25, %s28
      %p37 = scmp.eq.s32.totalorder %s20, 1
      %p38 = por %p36, %p37
      %p39 = scmp.ne.s32.totalorder %s28, %s29
      %p40 = scmp.eq.s32.totalorder %s20, 0
      %p41 = por %p39, %p40
      %p42 = scmp.ne.s32.totalorder %s28, %s29
      %p43 = scmp.eq.s32.totalorder %s21, 1
      %p44 = por %p42, %p43
      %p46 = scmp.ne.s32.totalorder %s29, %s45
      %p47 = scmp.eq.s32.totalorder %s21, 0
      %p48 = por %p46, %p47
      %s50 = sadd.s32 %s49, 1
      %p53 = scmp.eq.s32.totalorder %s15, 1
      %p54 = scmp.ne.s32.totalorder %s49, %s51
      %p55 = scmp.eq.s32.totalorder %s15, 0
      %p56 = por %p54, %p55
      %p57 = scmp.ne.s32.totalorder %s49, %s51
      %p58 = scmp.eq.s32.totalorder %s20, 1
      %p59 = por %p57, %p58
      %p60 = scmp.ne.s32.totalorder %s51, %s52
      %p61 = scmp.eq.s32.totalorder %s20, 0
      %p62 = por %p60, %p61
      %p63 = scmp.ne.s32.totalorder %s51, %s52
      %p64 = scmp.eq.s32.totalorder %s21, 1
      %p65 = por %p63, %p64
      %p67 = scmp.ne.s32.totalorder %s52, %s66
      %p68 = scmp.eq.s32.totalorder %s21, 0
      %p69 = por %p67, %p68
      %s70 = ssub.s32 %s15, %s22
      %p71 = scmp.eq.s32.totalorder %s70, 0
      %s73 = sadd.s32 %s72, 1
      %s74 = scalar_select %p71, %s72, %s73
      %p77 = pneg %p71
      %p78 = scmp.eq.s32.totalorder %s15, 1
      %p79 = por %p77, %p78
      %p80 = scmp.ne.s32.totalorder %s72, %s75
      %p81 = scmp.eq.s32.totalorder %s15, 0
      %p82 = por %p80, %p81
      %p83 = scmp.ne.s32.totalorder %s72, %s75
      %p84 = scmp.eq.s32.totalorder %s20, 1
      %p85 = por %p83, %p84
      %p86 = scmp.ne.s32.totalorder %s75, %s76
      %p87 = scmp.eq.s32.totalorder %s20, 0
      %p88 = por %p86, %p87
      %p89 = scmp.ne.s32.totalorder %s75, %s76
      %p90 = scmp.eq.s32.totalorder %s21, 1
      %p91 = por %p89, %p90
      %p93 = scmp.ne.s32.totalorder %s76, %s92
      %p94 = scmp.eq.s32.totalorder %s21, 0
      %p95 = por %p93, %p94
      %p96 = scmp.le.s32.totalorder 1, %s15
      %p97 = scmp.lt.s32.totalorder %s15, 3
      %p98 = pnand %p96, %p97
      %p99 = pneg %p98
      // Predicated region
      $region9: #{tpu_custom_call.1} parent=5 // pred_check
        _
      $region10: #{tpu_custom_call.1} parent=5 // pred_check_branch
        %101 = sbr.rel (%p98) target = $region12
      $region11: #{tpu_custom_call.1} parent=5 // pred_region
        %s102 = ssub.s32 %s15, 1
        // Predicated region
        $region13: #{tpu_custom_call.1} parent=11 // pred_check
          %p103 = pneg %p62
        $region14: #{tpu_custom_call.1} parent=11 // pred_check_branch
          %105 = sbr.rel (%p103) target = $region16
        $region15: #{tpu_custom_call.1} parent=11 // pred_region
          %s107 = ssub.s32 128, 128
          %108 = vsyncadd [#allocation6], %s107
          %s110 = sshll.u32 [#allocation5], 4
          %s111 = int_to_ptr.vmem [resolvable:$true] %s110
          %113 = dma.hbm_to_vmem [thread:$0]  %s1, 128, %s111, [#allocation6]
        $region16: #{tpu_custom_call.1} parent=11 // pred_fallthru
          _
      $region12: #{tpu_custom_call.1} parent=5 // pred_fallthru
        _
      %p114 = scmp.lt.s32.totalorder %s15, 2
      // Predicated region
      $region17: #{tpu_custom_call.1} parent=5 // pred_check
        %p115 = pneg %p114
      $region18: #{tpu_custom_call.1} parent=5 // pred_check_branch
        %117 = sbr.rel (%p115) target = $region20
      $region19: #{tpu_custom_call.1} parent=5 // pred_region
        // Predicated region
        $region21: #{tpu_custom_call.1} parent=19 // pred_check
          %p118 = pneg %p35
        $region22: #{tpu_custom_call.1} parent=19 // pred_check_branch
          %120 = sbr.rel (%p118) target = $region24
        $region23: #{tpu_custom_call.1} parent=19 // pred_region
          %s121 = sand.u32 %s25, 1
          %s122 = scalar_lea.sflag [#allocation3], %s121
          %s123 = sand.u32 %s25, 1
          %s124 = smul.addr %s123, 8
          %s125 = scalar_lea.vmem [#allocation2], %s124
          %s127 = ssub.s32 128, 128
          %128 = vsyncadd %s122, %s127
          %s129 = smul.addr %s15, 128
          %s130 = scalar_lea.hbm %s0, %s129
          %s132 = sshll.u32 %s125, 4
          %s133 = int_to_ptr.vmem [resolvable:$true] %s132
          %135 = dma.hbm_to_vmem [thread:$0]  %s130, 128, %s133, %s122
        $region24: #{tpu_custom_call.1} parent=19 // pred_fallthru
          _
      $region20: #{tpu_custom_call.1} parent=5 // pred_fallthru
        _
      %p136 = scmp.le.s32.totalorder 1, %s15
      %p137 = scmp.lt.s32.totalorder %s15, 3
      %p138 = pnand %p136, %p137
      %p139 = pneg %p138
      // Predicated region
      $region25: #{tpu_custom_call.1} parent=5 // pred_check
        _
      $region26: #{tpu_custom_call.1} parent=5 // pred_check_branch
        %141 = sbr.rel (%p138) target = $region28
      $region27: #{tpu_custom_call.1} parent=5 // pred_region
        %s142 = ssub.s32 %s15, 1
        %s143 = sand.u32 %s28, 1
        %s144 = scalar_lea.sflag [#allocation3], %s143
        %s145 = sand.u32 %s28, 1
        %s146 = smul.addr %s145, 8
        %s147 = scalar_lea.vmem [#allocation2], %s146
        // Predicated region
        $region29: #{tpu_custom_call.1} parent=27 // pred_check
          %p148 = pneg %p41
        $region30: #{tpu_custom_call.1} parent=27 // pred_check_branch
          %150 = sbr.rel (%p148) target = $region32
        $region31: #{tpu_custom_call.1} parent=27 // pred_region
          %151 = dma.done %s144, 128
        $region32: #{tpu_custom_call.1} parent=27 // pred_fallthru
          _
        // Predicated region
        $region33: #{tpu_custom_call.1} parent=27 // pred_check
          %p152 = pneg %p62
        $region34: #{tpu_custom_call.1} parent=27 // pred_check_branch
          %154 = sbr.rel (%p152) target = $region36
        $region35: #{tpu_custom_call.1} parent=27 // pred_region
          %155 = dma.done [#allocation6], 128
        $region36: #{tpu_custom_call.1} parent=27 // pred_fallthru
          _
        %s156 = sand.u32 %s28, 1
        %s157 = scalar_lea.sflag [#allocation3], %s156
        %s158 = sand.u32 %s28, 1
        %s159 = smul.addr %s158, 8
        %s160 = scalar_lea.vmem [#allocation2], %s159
        %p161 = pneg %p41
        %p162 = pneg %p38
        %p163 = pneg %p62
        %p164 = pneg %p59
        %p165 = pneg %p88
        %p166 = pneg %p85
        %s167 = sand.u32 %s75, 1
        %s168 = scalar_lea.sflag [#allocation4], %s167
        %s169 = sand.u32 %s75, 1
        %s170 = smul.addr %s169, 8
        %s171 = scalar_lea.vmem [#allocation7], %s170
        %v172 = vld [vmem:[%s147] sm:$0xff]
        %v173 = vld [vmem:[#allocation5] sm:$0xff]
        %v174 = vadd.f32 %v172, %v173
        %175 = vst [vmem:[%s171] sm:$0xff] %v174
        %s176 = sand.u32 %s75, 1
        %s177 = scalar_lea.sflag [#allocation4], %s176
        %s178 = sand.u32 %s75, 1
        %s179 = smul.addr %s178, 8
        %s180 = scalar_lea.vmem [#allocation7], %s179
        // Predicated region
        $region37: #{tpu_custom_call.1} parent=27 // pred_check
          %p181 = pneg %p85
        $region38: #{tpu_custom_call.1} parent=27 // pred_check_branch
          %183 = sbr.rel (%p181) target = $region40
        $region39: #{tpu_custom_call.1} parent=27 // pred_region
          %s185 = ssub.s32 128, 128
          %186 = vsyncadd %s177, %s185
          %s187 = smul.addr %s20, 128
          %s188 = scalar_lea.hbm %s2, %s187
          %s190 = sshll.u32 %s180, 4
          %s191 = int_to_ptr.vmem [resolvable:$true] %s190
          %193 = dma.vmem_to_hbm [thread:$0]  %s191, 128, %s188, %s177
        $region40: #{tpu_custom_call.1} parent=27 // pred_fallthru
          _
      $region28: #{tpu_custom_call.1} parent=5 // pred_fallthru
        _
      %p194 = scmp.le.s32.totalorder 2, %s15
      // Predicated region
      $region41: #{tpu_custom_call.1} parent=5 // pred_check
        %p195 = pneg %p194
      $region42: #{tpu_custom_call.1} parent=5 // pred_check_branch
        %197 = sbr.rel (%p195) target = $region44
      $region43: #{tpu_custom_call.1} parent=5 // pred_region
        %s198 = ssub.s32 %s15, 2
        // Predicated region
        $region45: #{tpu_custom_call.1} parent=43 // pred_check
          %p199 = pneg %p91
        $region46: #{tpu_custom_call.1} parent=43 // pred_check_branch
          %201 = sbr.rel (%p199) target = $region48
        $region47: #{tpu_custom_call.1} parent=43 // pred_region
          %s202 = sand.u32 %s76, 1
          %s203 = scalar_lea.sflag [#allocation4], %s202
          %s204 = sand.u32 %s76, 1
          %s205 = smul.addr %s204, 8
          %s206 = scalar_lea.vmem [#allocation7], %s205
          %207 = dma.done %s203, 128
        $region48: #{tpu_custom_call.1} parent=43 // pred_fallthru
          _
      $region44: #{tpu_custom_call.1} parent=5 // pred_fallthru
        _
    $region6: #{tpu_custom_call.1} parent=1 // loop_footer
      %s19 = sadd.s32 1, %s15
    $region7: #{tpu_custom_call.1} parent=1 // loop_footer_branch
      %14 = sbr.rel target = $region3
    $region8: #{tpu_custom_call.1} parent=1 // loop_exit
      _
    %208 = vsyncpa [#allocation3], 1
    %s209 = scalar_lea.sflag [#allocation3], 1
    %210 = vsyncpa %s209, 1
    %211 = vsyncpa [#allocation6], 1
    %212 = vsyncpa [#allocation4], 1
    %s213 = scalar_lea.sflag [#allocation4], 1
    %214 = vsyncpa %s213, 1

// kernel: tpu_custom_call.1
$region0: #{tpu_custom_call.1}
  #allocation0 [shape = 'u32[]', space=smem, size = 0x4, offset = 0x4, fixed_abs, tag = 'smem constant byte address 0x4 - core index']
  #allocation1 [shape = 'u32[144,128]{1,0:T(1,128)}', space=vmem, size = 0x12000, scoped, tag = 'internal scratch']
  %s0 = inlined_call_operand.hbm [shape: f32[2,8,32], index: 0, kind: input, shape index: {}]
  %s1 = inlined_call_operand.hbm [shape: f32[1,32], index: 1, kind: input, shape index: {}]
  %s2 = inlined_call_operand.hbm [shape: f32[1,32], index: 2, kind: input, shape index: {}]
  %s3 = inlined_call_operand.hbm [shape: f32[3,32,32], index: 3, kind: input, shape index: {}]
  %s4 = inlined_call_operand.hbm [shape: f32[3,1,32], index: 4, kind: input, shape index: {}]
  %s5 = inlined_call_operand.hbm [shape: f32[3,2,8,32], index: 5, kind: output, shape index: {}]
  %s6 = sld [smem:[#allocation0]]
  $region73: #{tpu_custom_call.1} parent=0
    _
  %s8 = ssub.s32 1, %s6
  %s9 = scalar_select 0, %s8, %s6
  $region1: #{tpu_custom_call.1} parent=0
    #allocation2 [shape = 'u8[8192]{0}', space=vmem, size = 0x2000, scoped, tag = 'input window, operand 0']
    #allocation3 [shape = 's32[2]{0}', space=sflag, size = 0x8, scoped, tag = 'scoped memory for tpu_custom_call.1']
    #allocation4 [shape = 's32[2]{0}', space=sflag, size = 0x8, scoped, tag = 'scoped memory for tpu_custom_call.1']
    #allocation5 [shape = 'u8[512]{0}', space=vmem, size = 0x400, scoped, tag = 'input window, operand 1, single buffered']
    #allocation6 [shape = 's32[1]{0}', space=sflag, size = 0x4, scoped, tag = 'scoped memory for tpu_custom_call.1']
    #allocation7 [shape = 'u8[512]{0}', space=vmem, size = 0x400, scoped, tag = 'input window, operand 2, single buffered']
    #allocation8 [shape = 'u8[49152]{0}', space=vmem, size = 0xc000, scoped, tag = 'input window, operand 3, single buffered']
    #allocation9 [shape = 's32[1]{0}', space=sflag, size = 0x4, scoped, tag = 'scoped memory for tpu_custom_call.1']
    #allocation10 [shape = 'u8[1536]{0}', space=vmem, size = 0x800, scoped, tag = 'input window, operand 4, single buffered']
    #allocation11 [shape = 'u8[24576]{0}', space=vmem, size = 0x6000, scoped, tag = 'output window, operand 0']
    %10 = vsyncpa [#allocation3], 0
    %s11 = scalar_lea.sflag [#allocation3], 1
    %12 = vsyncpa %s11, 0
    %13 = vsyncpa [#allocation6], 0
    %14 = vsyncpa [#allocation9], 0
    %15 = vsyncpa [#allocation4], 0
    %s16 = scalar_lea.sflag [#allocation4], 1
    %17 = vsyncpa %s16, 0
    loop: start=0, step=1, limit=4
    $region2: #{tpu_custom_call.1} parent=1 // loop_pre_header
      _
    $region3: #{tpu_custom_call.1} parent=1 // loop_header
      %s19 = sphi 0, %s23
      %p20 = scmp.ge.s32.totalorder %s19, 4
      %s26 = sphi 0, %s45
      %s27 = sphi 0, %s41
      %s28 = sphi 0, %s37
      %s29 = sphi 0, %s26
      %s30 = sphi 0, %s27
      %s31 = sphi 0, %s28
      %s32 = sphi 0, %s29
      %s33 = sphi 0, %s30
      %s34 = sphi 0, %s31
      %s50 = sphi 0, %s52
      %s53 = sphi 0, %s50
      %s54 = sphi 0, %s53
      %s70 = sphi 0, %s54
      %s74 = sphi 0, %s74
      %s76 = sphi 0, %s74
      %s77 = sphi 0, %s76
      %s91 = sphi 0, %s77
      %s95 = sphi 0, %s95
      %s97 = sphi 0, %s95
      %s98 = sphi 0, %s97
      %s112 = sphi 0, %s98
      %s118 = sphi 0, %s120
      %s121 = sphi 0, %s118
      %s122 = sphi 0, %s121
      %s138 = sphi 0, %s122
      %s144 = sphi 0, %s146
      %s147 = sphi 0, %s144
      %s148 = sphi 0, %s147
      %s164 = sphi 0, %s148
      %s174 = sphi 0, %s176
      %s177 = sphi 0, %s174
      %s178 = sphi 0, %s177
      %s194 = sphi 0, %s178
    $region4: #{tpu_custom_call.1} parent=1 // loop_header_branch
      %22 = sbr.rel (%p20) target = $region8
    $region5: #{tpu_custom_call.1} parent=1 // loop_body
      %s24 = ssub.s32 %s19, 1
      %s25 = ssub.s32 %s19, 2
      %s35 = sadd.s32 1, %s28
      %p36 = scmp.ge.s32.totalorder %s35, 1
      %s37 = scalar_select %p36, 0, %s35
      %s38 = sadd.s32 1, %s27
      %s39 = scalar_select %p36, %s38, %s27
      %p40 = scmp.ge.s32.totalorder %s39, 1
      %s41 = scalar_select %p40, 0, %s39
      %s42 = sadd.s32 1, %s26
      %s43 = scalar_select %p40, %s42, %s26
      %p44 = scmp.ge.s32.totalorder %s43, 2
      %s45 = scalar_select %p44, 0, %s43
      %s46 = ssub.s32 %s26, %s45
      %s47 = ssub.s32 %s27, %s41
      %s48 = sor.u32 %s46, %s47
      %p49 = scmp.eq.s32.totalorder %s48, 0
      %s51 = sadd.s32 %s50, 1
      %s52 = scalar_select %p49, %s50, %s51
      %p55 = pneg %p49
      %p56 = scmp.eq.s32.totalorder %s19, 1
      %p57 = por %p55, %p56
      %p58 = scmp.ne.s32.totalorder %s50, %s53
      %p59 = scmp.eq.s32.totalorder %s19, 0
      %p60 = por %p58, %p59
      %p61 = scmp.ne.s32.totalorder %s50, %s53
      %p62 = scmp.eq.s32.totalorder %s24, 1
      %p63 = por %p61, %p62
      %p64 = scmp.ne.s32.totalorder %s53, %s54
      %p65 = scmp.eq.s32.totalorder %s24, 0
      %p66 = por %p64, %p65
      %p67 = scmp.ne.s32.totalorder %s53, %s54
      %p68 = scmp.eq.s32.totalorder %s25, 1
      %p69 = por %p67, %p68
      %p71 = scmp.ne.s32.totalorder %s54, %s70
      %p72 = scmp.eq.s32.totalorder %s25, 0
      %p73 = por %p71, %p72
      %s75 = sadd.s32 %s74, 1
      %p78 = scmp.eq.s32.totalorder %s19, 1
      %p79 = scmp.ne.s32.totalorder %s74, %s76
      %p80 = scmp.eq.s32.totalorder %s19, 0
      %p81 = por %p79, %p80
      %p82 = scmp.ne.s32.totalorder %s74, %s76
      %p83 = scmp.eq.s32.totalorder %s24, 1
      %p84 = por %p82, %p83
      %p85 = scmp.ne.s32.totalorder %s76, %s77
      %p86 = scmp.eq.s32.totalorder %s24, 0
      %p87 = por %p85, %p86
      %p88 = scmp.ne.s32.totalorder %s76, %s77
      %p89 = scmp.eq.s32.totalorder %s25, 1
      %p90 = por %p88, %p89
      %p92 = scmp.ne.s32.totalorder %s77, %s91
      %p93 = scmp.eq.s32.totalorder %s25, 0
      %p94 = por %p92, %p93
      %s96 = sadd.s32 %s95, 1
      %p99 = scmp.eq.s32.totalorder %s19, 1
      %p100 = scmp.ne.s32.totalorder %s95, %s97
      %p101 = scmp.eq.s32.totalorder %s19, 0
      %p102 = por %p100, %p101
      %p103 = scmp.ne.s32.totalorder %s95, %s97
      %p104 = scmp.eq.s32.totalorder %s24, 1
      %p105 = por %p103, %p104
      %p106 = scmp.ne.s32.totalorder %s97, %s98
      %p107 = scmp.eq.s32.totalorder %s24, 0
      %p108 = por %p106, %p107
      %p109 = scmp.ne.s32.totalorder %s97, %s98
      %p110 = scmp.eq.s32.totalorder %s25, 1
      %p111 = por %p109, %p110
      %p113 = scmp.ne.s32.totalorder %s98, %s112
      %p114 = scmp.eq.s32.totalorder %s25, 0
      %p115 = por %p113, %p114
      %s116 = ssub.s32 %s28, %s37
      %p117 = scmp.eq.s32.totalorder %s116, 0
      %s119 = sadd.s32 %s118, 1
      %s120 = scalar_select %p117, %s118, %s119
      %p123 = pneg %p117
      %p124 = scmp.eq.s32.totalorder %s19, 1
      %p125 = por %p123, %p124
      %p126 = scmp.ne.s32.totalorder %s118, %s121
      %p127 = scmp.eq.s32.totalorder %s19, 0
      %p128 = por %p126, %p127
      %p129 = scmp.ne.s32.totalorder %s118, %s121
      %p130 = scmp.eq.s32.totalorder %s24, 1
      %p131 = por %p129, %p130
      %p132 = scmp.ne.s32.totalorder %s121, %s122
      %p133 = scmp.eq.s32.totalorder %s24, 0
      %p134 = por %p132, %p133
      %p135 = scmp.ne.s32.totalorder %s121, %s122
      %p136 = scmp.eq.s32.totalorder %s25, 1
      %p137 = por %p135, %p136
      %p139 = scmp.ne.s32.totalorder %s122, %s138
      %p140 = scmp.eq.s32.totalorder %s25, 0
      %p141 = por %p139, %p140
      %s142 = ssub.s32 %s28, %s37
      %p143 = scmp.eq.s32.totalorder %s142, 0
      %s145 = sadd.s32 %s144, 1
      %s146 = scalar_select %p143, %s144, %s145
      %p149 = pneg %p143
      %p150 = scmp.eq.s32.totalorder %s19, 1
      %p151 = por %p149, %p150
      %p152 = scmp.ne.s32.totalorder %s144, %s147
      %p153 = scmp.eq.s32.totalorder %s19, 0
      %p154 = por %p152, %p153
      %p155 = scmp.ne.s32.totalorder %s144, %s147
      %p156 = scmp.eq.s32.totalorder %s24, 1
      %p157 = por %p155, %p156
      %p158 = scmp.ne.s32.totalorder %s147, %s148
      %p159 = scmp.eq.s32.totalorder %s24, 0
      %p160 = por %p158, %p159
      %p161 = scmp.ne.s32.totalorder %s147, %s148
      %p162 = scmp.eq.s32.totalorder %s25, 1
      %p163 = por %p161, %p162
      %p165 = scmp.ne.s32.totalorder %s148, %s164
      %p166 = scmp.eq.s32.totalorder %s25, 0
      %p167 = por %p165, %p166
      %s168 = ssub.s32 %s26, %s45
      %s169 = ssub.s32 %s27, %s41
      %s170 = sor.u32 %s168, %s169
      %s171 = ssub.s32 %s28, %s37
      %s172 = sor.u32 %s170, %s171
      %p173 = scmp.eq.s32.totalorder %s172, 0
      %s175 = sadd.s32 %s174, 1
      %s176 = scalar_select %p173, %s174, %s175
      %p179 = pneg %p173
      %p180 = scmp.eq.s32.totalorder %s19, 1
      %p181 = por %p179, %p180
      %p182 = scmp.ne.s32.totalorder %s174, %s177
      %p183 = scmp.eq.s32.totalorder %s19, 0
      %p184 = por %p182, %p183
      %p185 = scmp.ne.s32.totalorder %s174, %s177
      %p186 = scmp.eq.s32.totalorder %s24, 1
      %p187 = por %p185, %p186
      %p188 = scmp.ne.s32.totalorder %s177, %s178
      %p189 = scmp.eq.s32.totalorder %s24, 0
      %p190 = por %p188, %p189
      %p191 = scmp.ne.s32.totalorder %s177, %s178
      %p192 = scmp.eq.s32.totalorder %s25, 1
      %p193 = por %p191, %p192
      %p195 = scmp.ne.s32.totalorder %s178, %s194
      %p196 = scmp.eq.s32.totalorder %s25, 0
      %p197 = por %p195, %p196
      %p198 = scmp.le.s32.totalorder 1, %s19
      %p199 = scmp.lt.s32.totalorder %s19, 3
      %p200 = pnand %p198, %p199
      %p201 = pneg %p200
      // Predicated region
      $region9: #{tpu_custom_call.1} parent=5 // pred_check
        _
      $region10: #{tpu_custom_call.1} parent=5 // pred_check_branch
        %203 = sbr.rel (%p200) target = $region12
      $region11: #{tpu_custom_call.1} parent=5 // pred_region
        %s204 = ssub.s32 %s19, 1
        // Predicated region
        $region13: #{tpu_custom_call.1} parent=11 // pred_check
          %p205 = pneg %p87
        $region14: #{tpu_custom_call.1} parent=11 // pred_check_branch
          %207 = sbr.rel (%p205) target = $region16
        $region15: #{tpu_custom_call.1} parent=11 // pred_region
          %s209 = ssub.s32 16, 16
          %210 = vsyncadd [#allocation6], %s209
          %s212 = sshll.u32 [#allocation5], 4
          %s213 = int_to_ptr.vmem [resolvable:$true] %s212
          %215 = dma.hbm_to_vmem [thread:$0]  %s1, 16, %s213, [#allocation6]
        $region16: #{tpu_custom_call.1} parent=11 // pred_fallthru
          _
        // Predicated region
        $region17: #{tpu_custom_call.1} parent=11 // pred_check
          %p216 = pneg %p108
        $region18: #{tpu_custom_call.1} parent=11 // pred_check_branch
          %218 = sbr.rel (%p216) target = $region20
        $region19: #{tpu_custom_call.1} parent=11 // pred_region
          %s220 = ssub.s32 16, 16
          %221 = vsyncadd [#allocation6], %s220
          %s223 = sshll.u32 [#allocation7], 4
          %s224 = int_to_ptr.vmem [resolvable:$true] %s223
          %226 = dma.hbm_to_vmem [thread:$0]  %s2, 16, %s224, [#allocation6]
        $region20: #{tpu_custom_call.1} parent=11 // pred_fallthru
          _
        // Predicated region
        $region21: #{tpu_custom_call.1} parent=11 // pred_check
          %p227 = pneg %p134
        $region22: #{tpu_custom_call.1} parent=11 // pred_check_branch
          %229 = sbr.rel (%p227) target = $region24
        $region23: #{tpu_custom_call.1} parent=11 // pred_region
          %s231 = ssub.s32 1536, 1536
          %232 = vsyncadd [#allocation9], %s231
          %s233 = smul.addr %s31, 128
          %s234 = scalar_lea.hbm %s3, %s233
          %s235 = sshll.u32 [#allocation8], 4
          %s236 = int_to_ptr.vmem [resolvable:$true] %s235
          %241 = dma.hbm_to_vmem [thread:$0]  %s234, 1536, %s236, [#allocation9], 128, 128, 8
        $region24: #{tpu_custom_call.1} parent=11 // pred_fallthru
          _
        // Predicated region
        $region25: #{tpu_custom_call.1} parent=11 // pred_check
          %p242 = pneg %p160
        $region26: #{tpu_custom_call.1} parent=11 // pred_check_branch
          %244 = sbr.rel (%p242) target = $region28
        $region27: #{tpu_custom_call.1} parent=11 // pred_region
          %s246 = ssub.s32 48, 48
          %247 = vsyncadd [#allocation9], %s246
          %s248 = smul.addr %s31, 16
          %s249 = scalar_lea.hbm %s4, %s248
          %s250 = sshll.u32 [#allocation10], 4
          %s251 = int_to_ptr.vmem [resolvable:$true] %s250
          %256 = dma.hbm_to_vmem [thread:$0]  %s249, 48, %s251, [#allocation9], 16, 16, 1
        $region28: #{tpu_custom_call.1} parent=11 // pred_fallthru
          _
      $region12: #{tpu_custom_call.1} parent=5 // pred_fallthru
        _
      %p257 = scmp.lt.s32.totalorder %s19, 2
      // Predicated region
      $region29: #{tpu_custom_call.1} parent=5 // pred_check
        %p258 = pneg %p257
      $region30: #{tpu_custom_call.1} parent=5 // pred_check_branch
        %260 = sbr.rel (%p258) target = $region32
      $region31: #{tpu_custom_call.1} parent=5 // pred_region
        // Predicated region
        $region33: #{tpu_custom_call.1} parent=31 // pred_check
          %p261 = pneg %p60
        $region34: #{tpu_custom_call.1} parent=31 // pred_check_branch
          %263 = sbr.rel (%p261) target = $region36
        $region35: #{tpu_custom_call.1} parent=31 // pred_region
          %s264 = sand.u32 %s50, 1
          %s265 = scalar_lea.sflag [#allocation3], %s264
          %s266 = sand.u32 %s50, 1
          %s267 = smul.addr %s266, 8
          %s268 = scalar_lea.vmem [#allocation2], %s267
          %s270 = ssub.s32 128, 128
          %271 = vsyncadd %s265, %s270
          %s272 = sadd.s32 %s27, %s26
          %s273 = smul.addr %s272, 128
          %s274 = scalar_lea.hbm %s0, %s273
          %s276 = sshll.u32 %s268, 4
          %s277 = int_to_ptr.vmem [resolvable:$true] %s276
          %279 = dma.hbm_to_vmem [thread:$0]  %s274, 128, %s277, %s265
        $region36: #{tpu_custom_call.1} parent=31 // pred_fallthru
          _
      $region32: #{tpu_custom_call.1} parent=5 // pred_fallthru
        _
      %p280 = scmp.le.s32.totalorder 1, %s19
      %p281 = scmp.lt.s32.totalorder %s19, 3
      %p282 = pnand %p280, %p281
      %p283 = pneg %p282
      // Predicated region
      $region37: #{tpu_custom_call.1} parent=5 // pred_check
        _
      $region38: #{tpu_custom_call.1} parent=5 // pred_check_branch
        %285 = sbr.rel (%p282) target = $region40
      $region39: #{tpu_custom_call.1} parent=5 // pred_region
        %s286 = ssub.s32 %s19, 1
        %s287 = sand.u32 %s53, 1
        %s288 = scalar_lea.sflag [#allocation3], %s287
        %s289 = sand.u32 %s53, 1
        %s290 = smul.addr %s289, 8
        %s291 = scalar_lea.vmem [#allocation2], %s290
        // Predicated region
        $region41: #{tpu_custom_call.1} parent=39 // pred_check
          %p292 = pneg %p66
        $region42: #{tpu_custom_call.1} parent=39 // pred_check_branch
          %294 = sbr.rel (%p292) target = $region44
        $region43: #{tpu_custom_call.1} parent=39 // pred_region
          %295 = dma.done %s288, 128
        $region44: #{tpu_custom_call.1} parent=39 // pred_fallthru
          _
        // Predicated region
        $region45: #{tpu_custom_call.1} parent=39 // pred_check
          %p296 = pneg %p87
        $region46: #{tpu_custom_call.1} parent=39 // pred_check_branch
          %298 = sbr.rel (%p296) target = $region48
        $region47: #{tpu_custom_call.1} parent=39 // pred_region
          %299 = dma.done [#allocation6], 16
        $region48: #{tpu_custom_call.1} parent=39 // pred_fallthru
          _
        // Predicated region
        $region49: #{tpu_custom_call.1} parent=39 // pred_check
          %p300 = pneg %p108
        $region50: #{tpu_custom_call.1} parent=39 // pred_check_branch
          %302 = sbr.rel (%p300) target = $region52
        $region51: #{tpu_custom_call.1} parent=39 // pred_region
          %303 = dma.done [#allocation6], 16
        $region52: #{tpu_custom_call.1} parent=39 // pred_fallthru
          _
        // Predicated region
        $region53: #{tpu_custom_call.1} parent=39 // pred_check
          %p304 = pneg %p134
        $region54: #{tpu_custom_call.1} parent=39 // pred_check_branch
          %306 = sbr.rel (%p304) target = $region56
        $region55: #{tpu_custom_call.1} parent=39 // pred_region
          %307 = dma.done [#allocation9], 1536
        $region56: #{tpu_custom_call.1} parent=39 // pred_fallthru
          _
        // Predicated region
        $region57: #{tpu_custom_call.1} parent=39 // pred_check
          %p308 = pneg %p160
        $region58: #{tpu_custom_call.1} parent=39 // pred_check_branch
          %310 = sbr.rel (%p308) target = $region60
        $region59: #{tpu_custom_call.1} parent=39 // pred_region
          %311 = dma.done [#allocation9], 48
        $region60: #{tpu_custom_call.1} parent=39 // pred_fallthru
          _
        %s312 = sand.u32 %s53, 1
        %s313 = scalar_lea.sflag [#allocation3], %s312
        %s314 = sand.u32 %s53, 1
        %s315 = smul.addr %s314, 8
        %s316 = scalar_lea.vmem [#allocation2], %s315
        %p317 = pneg %p66
        %p318 = pneg %p63
        %p319 = pneg %p87
        %p320 = pneg %p84
        %p321 = pneg %p108
        %p322 = pneg %p105
        %p323 = pneg %p134
        %p324 = pneg %p131
        %p325 = pneg %p160
        %p326 = pneg %p157
        %p327 = pneg %p190
        %p328 = pneg %p187
        %s329 = sand.u32 %s177, 1
        %s330 = scalar_lea.sflag [#allocation4], %s329
        %s331 = sand.u32 %s177, 1
        %s332 = smul.addr %s331, 24
        %s333 = scalar_lea.vmem [#allocation11], %s332
        %v334 = vld [vmem:[%s291] sm:$0xff]
        %vm335 = vcmask 261120
        %v336 = vsel %vm335, %v334, 0.0
        %337 = vadd.xlane.f32.xlu0 %v336
        %v338 = vpop.xlane.xlu0 %337
        %v339 = vrcp.pop 32.0
        %v340 = vmul.f32 %v338, %v339
        %v341 = vsub.f32 %v334, %v340
        %v342 = vmul.f32 %v341, %v341
        %v343 = vsel %vm335, %v342, 0.0
        %344 = vadd.xlane.f32.xlu0 %v343
        %v345 = vpop.xlane.xlu0 %344
        %v346 = vmul.f32 %v345, %v339
        %v347 = vadd.f32 %v346, 1e-06
        %v348 = vrsqrt.pop %v347
        %v349 = vmul.f32 %v341, %v348
        %v350 = vld [vmem:[#allocation5] sm:$0x1]
        %v352 = vlaneseq
        %v353 = vshrl.u32 %v352, 7
        %v354 = vsub.s32 0, %v353
        %v355 = vrot.slane %v350, %v354
        %v357 = vmul.f32 %v349, %v355
        %v358 = vld [vmem:[#allocation7] sm:$0x1]
        %v360 = vlaneseq
        %v361 = vshrl.u32 %v360, 7
        %v362 = vsub.s32 0, %v361
        %v363 = vrot.slane %v358, %v362
        %v365 = vadd.f32 %v357, %v363
        %v366 = vld [vmem:[#allocation8] sm:$0xff]
        %v367 = vld [vmem:[#allocation8 + $0x8] sm:$0xff]
        %v368 = vld [vmem:[#allocation8 + $0x10] sm:$0xff]
        %v369 = vld [vmem:[#allocation8 + $0x18] sm:$0xff]
        %v370 = vld [vmem:[#allocation10] sm:$0x1]
        %v372 = vlaneseq
        %v373 = vshrl.u32 %v372, 7
        %v374 = vsub.s32 0, %v373
        %v375 = vrot.slane %v370, %v374
        %v378 = vsel %vm335, %v365, 0
        %380 = vmatprep.subr.mxu0 0.0
        %381 = vmatpush1.msra.mxu0 %v366
        %382 = vmatprep.subr.mxu0 0.0
        %383 = vmatpush1.msra.mxu0 %v367
        %384 = vmatprep.subr.mxu0 0.0
        %385 = vmatpush1.msra.mxu0 %v368
        %386 = vmatprep.subr.mxu0 0.0
        %387 = vmatpush1.msra.mxu0 %v369
        %388 = vmatprep.subr.mxu0 0.0
        %389 = vmatpush1.msra.mxu0 0.0
        %390 = vmatprep.subr.mxu0 0.0
        %391 = vmatpush1.msra.mxu0 0.0
        %392 = vmatprep.subr.mxu0 0.0
        %393 = vmatpush1.msra.mxu0 0.0
        %394 = vmatprep.subr.mxu0 0.0
        %395 = vmatpush1.msra.mxu0 0.0
        %396 = vmatprep.subr.mxu0 0.0
        %397 = vmatpush1.msra.mxu0 0.0
        %398 = vmatprep.subr.mxu0 0.0
        %399 = vmatpush1.msra.mxu0 0.0
        %400 = vmatprep.subr.mxu0 0.0
        %401 = vmatpush1.msra.mxu0 0.0
        %402 = vmatprep.subr.mxu0 0.0
        %403 = vmatpush1.msra.mxu0 0.0
        %404 = vmatprep.subr.mxu0 0.0
        %405 = vmatpush1.msra.mxu0 0.0
        %406 = vmatprep.subr.mxu0 0.0
        %407 = vmatpush1.msra.mxu0 0.0
        %408 = vmatprep.subr.mxu0 0.0
        %409 = vmatpush1.msra.mxu0 0.0
        %410 = vmatprep.subr.mxu0 0.0
        %411 = vmatpush1.msra.mxu0 0.0
        %412 = vmatprep.subr.mxu0 0.0
        %413 = vmatpush1.msra.mxu0 0.0
        %414 = vmatprep.subr.mxu0 0.0
        %415 = vmatpush1.msra.mxu0 0.0
        %416 = vmatprep.subr.mxu0 0.0
        %417 = vmatpush1.msra.mxu0 0.0
        %418 = vmatprep.subr.mxu0 0.0
        %419 = vmatpush1.msra.mxu0 0.0
        %420 = vmatprep.subr.mxu0 0.0
        %421 = vmatpush1.msra.mxu0 0.0
        %422 = vmatprep.subr.mxu0 0.0
        %423 = vmatpush1.msra.mxu0 0.0
        %424 = vmatprep.subr.mxu0 0.0
        %425 = vmatpush1.msra.mxu0 0.0
        %426 = vmatprep.subr.mxu0 0.0
        %427 = vmatpush1.msra.mxu0 0.0
        %428 = vmatprep.subr.mxu0 0.0
        %429 = vmatpush1.msra.mxu0 0.0
        %430 = vmatprep.subr.mxu0 0.0
        %431 = vmatpush1.msra.mxu0 0.0
        %432 = vmatprep.subr.mxu0 0.0
        %433 = vmatpush1.msra.mxu0 0.0
        %434 = vmatprep.subr.mxu0 0.0
        %435 = vmatpush1.msra.mxu0 0.0
        %436 = vmatprep.subr.mxu0 0.0
        %437 = vmatpush1.msra.mxu0 0.0
        %438 = vmatprep.subr.mxu0 0.0
        %439 = vmatpush1.msra.mxu0 0.0
        %440 = vmatprep.subr.mxu0 0.0
        %441 = vmatpush1.msra.mxu0 0.0
        %442 = vmatprep.subr.mxu0 0.0
        %443 = vmatpush1.msra.mxu0 0.0
        %444 = vmatprep.mubr.f32.mxu0 0.0
        %445 = vmatmul.mubr.f32.gmra.mrb[0].mxu0 %v378
        %v446 = vpop.f32.mrb[0].mxu0
        %v447 = vadd.f32 %v375, %v446
        %v448 = vpop.f32.mrb[0].mxu0
        %449 = vdwg.mxu0
        %450 = vst.msk [vmem:[%s333] sm:$0xff] %vm335, %v447
        %s451 = scalar_lea.vmem [#allocation8], 32
        %v452 = vld [vmem:[%s451] sm:$0xff]
        %v453 = vld [vmem:[%s451 + $0x8] sm:$0xff]
        %v454 = vld [vmem:[%s451 + $0x10] sm:$0xff]
        %v455 = vld [vmem:[%s451 + $0x18] sm:$0xff]
        %s456 = scalar_lea.vmem [#allocation10], 1
        %v457 = vld [vmem:[%s456] sm:$0x1]
        %v459 = vlaneseq
        %v460 = vshrl.u32 %v459, 7
        %v461 = vsub.s32 0, %v460
        %v462 = vrot.slane %v457, %v461
        %464 = vmatprep.subr.mxu0 0.0
        %465 = vmatpush1.msra.mxu0 %v452
        %466 = vmatprep.subr.mxu0 0.0
        %467 = vmatpush1.msra.mxu0 %v453
        %468 = vmatprep.subr.mxu0 0.0
        %469 = vmatpush1.msra.mxu0 %v454
        %470 = vmatprep.subr.mxu0 0.0
        %471 = vmatpush1.msra.mxu0 %v455
        %472 = vmatprep.subr.mxu0 0.0
        %473 = vmatpush1.msra.mxu0 0.0
        %474 = vmatprep.subr.mxu0 0.0
        %475 = vmatpush1.msra.mxu0 0.0
        %476 = vmatprep.subr.mxu0 0.0
        %477 = vmatpush1.msra.mxu0 0.0
        %478 = vmatprep.subr.mxu0 0.0
        %479 = vmatpush1.msra.mxu0 0.0
        %480 = vmatprep.subr.mxu0 0.0
        %481 = vmatpush1.msra.mxu0 0.0
        %482 = vmatprep.subr.mxu0 0.0
        %483 = vmatpush1.msra.mxu0 0.0
        %484 = vmatprep.subr.mxu0 0.0
        %485 = vmatpush1.msra.mxu0 0.0
        %486 = vmatprep.subr.mxu0 0.0
        %487 = vmatpush1.msra.mxu0 0.0
        %488 = vmatprep.subr.mxu0 0.0
        %489 = vmatpush1.msra.mxu0 0.0
        %490 = vmatprep.subr.mxu0 0.0
        %491 = vmatpush1.msra.mxu0 0.0
        %492 = vmatprep.subr.mxu0 0.0
        %493 = vmatpush1.msra.mxu0 0.0
        %494 = vmatprep.subr.mxu0 0.0
        %495 = vmatpush1.msra.mxu0 0.0
        %496 = vmatprep.subr.mxu0 0.0
        %497 = vmatpush1.msra.mxu0 0.0
        %498 = vmatprep.subr.mxu0 0.0
        %499 = vmatpush1.msra.mxu0 0.0
        %500 = vmatprep.subr.mxu0 0.0
        %501 = vmatpush1.msra.mxu0 0.0
        %502 = vmatprep.subr.mxu0 0.0
        %503 = vmatpush1.msra.mxu0 0.0
        %504 = vmatprep.subr.mxu0 0.0
        %505 = vmatpush1.msra.mxu0 0.0
        %506 = vmatprep.subr.mxu0 0.0
        %507 = vmatpush1.msra.mxu0 0.0
        %508 = vmatprep.subr.mxu0 0.0
        %509 = vmatpush1.msra.mxu0 0.0
        %510 = vmatprep.subr.mxu0 0.0
        %511 = vmatpush1.msra.mxu0 0.0
        %512 = vmatprep.subr.mxu0 0.0
        %513 = vmatpush1.msra.mxu0 0.0
        %514 = vmatprep.subr.mxu0 0.0
        %515 = vmatpush1.msra.mxu0 0.0
        %516 = vmatprep.subr.mxu0 0.0
        %517 = vmatpush1.msra.mxu0 0.0
        %518 = vmatprep.subr.mxu0 0.0
        %519 = vmatpush1.msra.mxu0 0.0
        %520 = vmatprep.subr.mxu0 0.0
        %521 = vmatpush1.msra.mxu0 0.0
        %522 = vmatprep.subr.mxu0 0.0
        %523 = vmatpush1.msra.mxu0 0.0
        %524 = vmatprep.subr.mxu0 0.0
        %525 = vmatpush1.msra.mxu0 0.0
        %526 = vmatprep.subr.mxu0 0.0
        %527 = vmatpush1.msra.mxu0 0.0
        %528 = vmatprep.mubr.f32.mxu0 0.0
        %529 = vmatmul.mubr.f32.gmra.mrb[0].mxu0 %v378
        %v530 = vpop.f32.mrb[0].mxu0
        %v531 = vadd.f32 %v462, %v530
        %v532 = vpop.f32.mrb[0].mxu0
        %533 = vdwg.mxu0
        %s534 = scalar_lea.vmem %s333, 8 [#allocation11]
        %535 = vst.msk [vmem:[%s534] sm:$0xff] %vm335, %v531
        %s536 = scalar_lea.vmem [#allocation8], 64
        %v537 = vld [vmem:[%s536] sm:$0xff]
        %v538 = vld [vmem:[%s536 + $0x8] sm:$0xff]
        %v539 = vld [vmem:[%s536 + $0x10] sm:$0xff]
        %v540 = vld [vmem:[%s536 + $0x18] sm:$0xff]
        %s541 = scalar_lea.vmem [#allocation10], 2
        %v542 = vld [vmem:[%s541] sm:$0x1]
        %v544 = vlaneseq
        %v545 = vshrl.u32 %v544, 7
        %v546 = vsub.s32 0, %v545
        %v547 = vrot.slane %v542, %v546
        %549 = vmatprep.subr.mxu0 0.0
        %550 = vmatpush1.msra.mxu0 %v537
        %551 = vmatprep.subr.mxu0 0.0
        %552 = vmatpush1.msra.mxu0 %v538
        %553 = vmatprep.subr.mxu0 0.0
        %554 = vmatpush1.msra.mxu0 %v539
        %555 = vmatprep.subr.mxu0 0.0
        %556 = vmatpush1.msra.mxu0 %v540
        %557 = vmatprep.subr.mxu0 0.0
        %558 = vmatpush1.msra.mxu0 0.0
        %559 = vmatprep.subr.mxu0 0.0
        %560 = vmatpush1.msra.mxu0 0.0
        %561 = vmatprep.subr.mxu0 0.0
        %562 = vmatpush1.msra.mxu0 0.0
        %563 = vmatprep.subr.mxu0 0.0
        %564 = vmatpush1.msra.mxu0 0.0
        %565 = vmatprep.subr.mxu0 0.0
        %566 = vmatpush1.msra.mxu0 0.0
        %567 = vmatprep.subr.mxu0 0.0
        %568 = vmatpush1.msra.mxu0 0.0
        %569 = vmatprep.subr.mxu0 0.0
        %570 = vmatpush1.msra.mxu0 0.0
        %571 = vmatprep.subr.mxu0 0.0
        %572 = vmatpush1.msra.mxu0 0.0
        %573 = vmatprep.subr.mxu0 0.0
        %574 = vmatpush1.msra.mxu0 0.0
        %575 = vmatprep.subr.mxu0 0.0
        %576 = vmatpush1.msra.mxu0 0.0
        %577 = vmatprep.subr.mxu0 0.0
        %578 = vmatpush1.msra.mxu0 0.0
        %579 = vmatprep.subr.mxu0 0.0
        %580 = vmatpush1.msra.mxu0 0.0
        %581 = vmatprep.subr.mxu0 0.0
        %582 = vmatpush1.msra.mxu0 0.0
        %583 = vmatprep.subr.mxu0 0.0
        %584 = vmatpush1.msra.mxu0 0.0
        %585 = vmatprep.subr.mxu0 0.0
        %586 = vmatpush1.msra.mxu0 0.0
        %587 = vmatprep.subr.mxu0 0.0
        %588 = vmatpush1.msra.mxu0 0.0
        %589 = vmatprep.subr.mxu0 0.0
        %590 = vmatpush1.msra.mxu0 0.0
        %591 = vmatprep.subr.mxu0 0.0
        %592 = vmatpush1.msra.mxu0 0.0
        %593 = vmatprep.subr.mxu0 0.0
        %594 = vmatpush1.msra.mxu0 0.0
        %595 = vmatprep.subr.mxu0 0.0
        %596 = vmatpush1.msra.mxu0 0.0
        %597 = vmatprep.subr.mxu0 0.0
        %598 = vmatpush1.msra.mxu0 0.0
        %599 = vmatprep.subr.mxu0 0.0
        %600 = vmatpush1.msra.mxu0 0.0
        %601 = vmatprep.subr.mxu0 0.0
        %602 = vmatpush1.msra.mxu0 0.0
        %603 = vmatprep.subr.mxu0 0.0
        %604 = vmatpush1.msra.mxu0 0.0
        %605 = vmatprep.subr.mxu0 0.0
        %606 = vmatpush1.msra.mxu0 0.0
        %607 = vmatprep.subr.mxu0 0.0
        %608 = vmatpush1.msra.mxu0 0.0
        %609 = vmatprep.subr.mxu0 0.0
        %610 = vmatpush1.msra.mxu0 0.0
        %611 = vmatprep.subr.mxu0 0.0
        %612 = vmatpush1.msra.mxu0 0.0
        %613 = vmatprep.mubr.f32.mxu0 0.0
        %614 = vmatmul.mubr.f32.gmra.mrb[0].mxu0 %v378
        %v615 = vpop.f32.mrb[0].mxu0
        %v616 = vadd.f32 %v547, %v615
        %v617 = vpop.f32.mrb[0].mxu0
        %618 = vdwg.mxu0
        %s619 = scalar_lea.vmem %s333, 16 [#allocation11]
        %620 = vst.msk [vmem:[%s619] sm:$0xff] %vm335, %v616
        %s621 = sand.u32 %s177, 1
        %s622 = scalar_lea.sflag [#allocation4], %s621
        %s623 = sand.u32 %s177, 1
        %s624 = smul.addr %s623, 24
        %s625 = scalar_lea.vmem [#allocation11], %s624
        // Predicated region
        $region61: #{tpu_custom_call.1} parent=39 // pred_check
          %p626 = pneg %p187
        $region62: #{tpu_custom_call.1} parent=39 // pred_check_branch
          %628 = sbr.rel (%p626) target = $region64
        $region63: #{tpu_custom_call.1} parent=39 // pred_region
          %s630 = ssub.s32 384, 384
          %631 = vsyncadd %s622, %s630
          %s632 = sadd.s32 %s31, %s30
          %s633 = sadd.s32 %s632, %s29
          %s634 = smul.addr %s633, 128
          %s635 = scalar_lea.hbm %s5, %s634
          %s636 = sshll.u32 %s625, 4
          %s637 = int_to_ptr.vmem [resolvable:$true] %s636
          %642 = dma.vmem_to_hbm [thread:$0]  %s637, 384, %s635, %s622, 128, 256, 8
        $region64: #{tpu_custom_call.1} parent=39 // pred_fallthru
          _
      $region40: #{tpu_custom_call.1} parent=5 // pred_fallthru
        _
      %p643 = scmp.le.s32.totalorder 2, %s19
      // Predicated region
      $region65: #{tpu_custom_call.1} parent=5 // pred_check
        %p644 = pneg %p643
      $region66: #{tpu_custom_call.1} parent=5 // pred_check_branch
        %646 = sbr.rel (%p644) target = $region68
      $region67: #{tpu_custom_call.1} parent=5 // pred_region
        %s647 = ssub.s32 %s19, 2
        // Predicated region
        $region69: #{tpu_custom_call.1} parent=67 // pred_check
          %p648 = pneg %p193
        $region70: #{tpu_custom_call.1} parent=67 // pred_check_branch
          %650 = sbr.rel (%p648) target = $region72
        $region71: #{tpu_custom_call.1} parent=67 // pred_region
          %s651 = sand.u32 %s178, 1
          %s652 = scalar_lea.sflag [#allocation4], %s651
          %s653 = sand.u32 %s178, 1
          %s654 = smul.addr %s653, 24
          %s655 = scalar_lea.vmem [#allocation11], %s654
          %656 = dma.done %s652, 384
        $region72: #{tpu_custom_call.1} parent=67 // pred_fallthru
          _
      $region68: #{tpu_custom_call.1} parent=5 // pred_fallthru
        _
    $region6: #{tpu_custom_call.1} parent=1 // loop_footer
      %s23 = sadd.s32 1, %s19
    $region7: #{tpu_custom_call.1} parent=1 // loop_footer_branch
      %18 = sbr.rel target = $region3
    $region8: #{tpu_custom_call.1} parent=1 // loop_exit
      _
    %657 = vsyncpa [#allocation3], 1
    %s658 = scalar_lea.sflag [#allocation3], 1
    %659 = vsyncpa %s658, 1
    %660 = vsyncpa [#allocation6], 1
    %661 = vsyncpa [#allocation9], 1
    %662 = vsyncpa [#allocation4], 1
    %s663 = scalar_lea.sflag [#allocation4], 1
    %664 = vsyncpa %s663, 1

</llo_original>
